<compile_context>
chip_gen: v6e
topology: v6e:2x2x1
jax: 0.10.0
libtpu: 0.0.40
codegen_flags: <defaults>
</compile_context>

<pallas_src>
import functools

import jax
import jax.numpy as jnp
from jax import lax
from jax.experimental import pallas as pl
from jax.experimental.pallas import tpu as pltpu


def _round_up(n, m):
    return ((n + m - 1) // m) * m


def _primary_caps_kernel(x_ref, w_ref, o_ref, *, caps_dim, units_pad, nodes, batch_tile):
    # x_ref: (1, Kp, BT*W)   BT batch elements' features (+ ones row for fused bias)
    # w_ref: (D*UP, Kp)      all units' weights, d-major rows (row = d*UP + i); bias in col K
    # o_ref: (BT, UP, D*W)   squashed primary capsules (unit axis padded to UP)
    x = x_ref[0]                                                  # (Kp, BT*W)
    w = w_ref[...]                                                # (D*UP, Kp)

    # One MXU matmul for ALL capsule units of ALL BT batch elements (bias fused).
    s = jnp.dot(w, x, preferred_element_type=jnp.float32)        # (D*UP, BT*W)

    for bt in range(batch_tile):                                  # static unroll
        # d-major, sublane-tile-aligned slices of the matmul result for this batch elem.
        sl = [s[d * units_pad:(d + 1) * units_pad, bt * nodes:(bt + 1) * nodes]
              for d in range(caps_dim)]                           # D x (UP, W)

        # Squash magnitude over the FULL flattened capsule dim (D*W), accumulated in
        # registers — no output-buffer readback.
        mag_sq = jnp.sum(sl[0] * sl[0], axis=-1, keepdims=True)   # (UP, 1)
        for d in range(1, caps_dim):
            mag_sq = mag_sq + jnp.sum(sl[d] * sl[d], axis=-1, keepdims=True)

        # scale = mag_sq / (1 + mag_sq) / sqrt(mag_sq); rsqrt -> EUP slot, eps removes
        # the mag == 0 NaN hazard (deviation from the torch reference, documented above).
        scale = mag_sq * lax.rsqrt(mag_sq + 1e-12) / (1.0 + mag_sq)

        # Scale each d-slice in registers and store it exactly once into the lane-dense
        # output block (flatten order d*W + w, matching torch's stacked-view layout).
        for d in range(caps_dim):
            o_ref[bt, :, d * nodes:(d + 1) * nodes] = (sl[d] * scale).astype(o_ref.dtype)


def primary_capsule_forward(x_nchw, weights, bias, *, target_lanes=256):
    """
    x_nchw : (B, C_in, in_units, W_nodes)        float32
    weights: (num_units, D, C_in * in_units)     float32  (D = capsule_dimensions)
    bias   : (num_units, D)                      float32
    returns: (B, num_units, D * W_nodes)         float32  (squashed primary capsules)
    """
    B, C, H, W = x_nchw.shape
    num_units, D, K = weights.shape
    assert K == C * H

    Kp = _round_up(K + 1, 8)          # contraction dim incl. the fused-bias "ones" row
    UP = _round_up(num_units, 8)      # unit axis padded -> tile-aligned d-major slices

    # Batch tile: widen the MXU RHS toward `target_lanes` lanes, but keep >= 2 grid
    # steps whenever B >= 2 so both v7x TensorCores get work.
    BT = min(B, max(1, -(-target_lanes // W)))
    if B >= 2:
        BT = min(BT, max(1, B // 2))
    G = -(-B // BT)                   # grid steps
    Bp = G * BT                       # padded batch

    # ---- Stage x as (G, Kp, BT*W): column index = bt*W + w, row K = 1 (bias feature).
    x_flat = x_nchw.reshape(B, K, W)
    if Bp != B:
        x_flat = jnp.pad(x_flat, ((0, Bp - B), (0, 0), (0, 0)))
    x_g = (x_flat.reshape(G, BT, K, W)
                 .transpose(0, 2, 1, 3)
                 .reshape(G, K, BT * W))
    x_staged = jnp.concatenate(
        [x_g,
         jnp.ones((G, 1, BT * W), jnp.float32),                   # fused-bias row
         jnp.zeros((G, Kp - K - 1, BT * W), jnp.float32)], axis=1)  # (G, Kp, BT*W)

    # ---- Stack all unit weights d-major (row = d*UP + i) with bias fused as column K.
    w_dmaj = jnp.transpose(weights, (1, 0, 2))                    # (D, U, K)
    w_dmaj = jnp.pad(w_dmaj, ((0, 0), (0, UP - num_units), (0, 0)))     # (D, UP, K)
    b_dmaj = jnp.pad(bias.T, ((0, 0), (0, UP - num_units)))       # (D, UP)
    w_aug = jnp.concatenate(
        [w_dmaj,
         b_dmaj[:, :, None],
         jnp.zeros((D, UP, Kp - K - 1), jnp.float32)], axis=-1)   # (D, UP, Kp)
    w_stacked = w_aug.reshape(D * UP, Kp)                         # (D*UP, Kp)

    kernel = functools.partial(_primary_caps_kernel, caps_dim=D, units_pad=UP,
                               nodes=W, batch_tile=BT)

    # TODO(synk): optional bf16 cast of w/x (f32 accumulate) once tolerance allows ~1e-3.
    out = pl.pallas_call(
        kernel,
        out_shape=jax.ShapeDtypeStruct((Bp, UP, D * W), jnp.float32),
        grid_spec=pltpu.PrefetchScalarGridSpec(
            num_scalar_prefetch=0,
            grid=(G,),
            in_specs=[
                pl.BlockSpec((1, Kp, BT * W), lambda g: (g, 0, 0)),   # x (per grid step)
                pl.BlockSpec((D * UP, Kp), lambda g: (0, 0)),         # weights (resident)
            ],
            out_specs=pl.BlockSpec((BT, UP, D * W), lambda g: (g, 0, 0)),
        ),
        compiler_params=pltpu.CompilerParams(
            dimension_semantics=("parallel",)),
    )(x_staged, w_stacked)

    return out[:B, :num_units, :]


def _reference(x_nchw, weights, bias):
    B, C, H, W = x_nchw.shape
    num_units, D, K = weights.shape
    x_flat = x_nchw.reshape(B, K, W)
    u = jnp.einsum("bkw,idk->bidw", x_flat, weights) + bias[None, :, :, None]
    u = u.reshape(B, num_units, D * W)
    mag_sq = jnp.sum(u ** 2, axis=2, keepdims=True)
    mag = jnp.sqrt(mag_sq)
    return mag_sq / (1.0 + mag_sq) * (u / mag)


if __name__ == "__main__":
    # Small shapes consistent with the module:
    #   in_units (GCN layers) = 3, in_channels = 4, num_units = 4,
    #   capsule_dimensions = 8, batch = 2, nodes = 16.
    B, C_in, in_units, nodes = 2, 4, 3, 16
    num_units, caps_dim = 4, 8
    K = C_in * in_units

    key = jax.random.PRNGKey(0)
    kx, kw, kb = jax.random.split(key, 3)

    x = jax.random.normal(kx, (B, C_in, in_units, nodes), dtype=jnp.float32)

    # Deterministic parameter init (Conv default-style uniform ±1/sqrt(fan_in));
    # PyTorch weight shape (D, C, in_units, 1) flattened over (C, in_units) -> (D, K).
    bound = 1.0 / jnp.sqrt(jnp.float32(K))
    weights = jax.random.uniform(kw, (num_units, caps_dim, K),
                                 minval=-bound, maxval=bound, dtype=jnp.float32)
    bias = jax.random.uniform(kb, (num_units, caps_dim),
                              minval=-bound, maxval=bound, dtype=jnp.float32)

    out = jax.block_until_ready(primary_capsule_forward(x, weights, bias))
    ref = _reference(x, weights, bias)
    assert out.shape == (B, num_units, caps_dim * nodes)
    assert jnp.allclose(out, ref, atol=1e-5, rtol=1e-5)

    # Also exercise the batch-folding path (BT > 1 -> 128-lane MXU RHS, 2 grid steps).
    B2 = 16
    x2 = jax.random.normal(jax.random.PRNGKey(1), (B2, C_in, in_units, nodes),
                           dtype=jnp.float32)
    out2 = jax.block_until_ready(primary_capsule_forward(x2, weights, bias))
    ref2 = _reference(x2, weights, bias)
    assert out2.shape == (B2, num_units, caps_dim * nodes)
    assert jnp.allclose(out2, ref2, atol=1e-5, rtol=1e-5)

    print("KERNEL_OK")
</pallas_src>

<mosaic_0001>
module attributes {stable_mosaic.version = 11 : i64} {
  func.func @_primary_caps_kernel(%arg0: i32, %arg1: memref<1x16x16xf32, #tpu.memory_space<vmem>>, %arg2: memref<64x16xf32, #tpu.memory_space<vmem>>, %arg3: memref<1x8x128xf32, #tpu.memory_space<vmem>>) attributes {dimension_semantics = [#tpu.dimension_semantics<parallel>], iteration_bounds = array<i64: 2>, scalar_prefetch = 0 : i64, scratch_operands = 0 : i64, tpu.core_type = #tpu.core_type<tc>, window_params = [{transform_indices = @transform_0, window_bounds = array<i64: 1, 16, 16>}, {pipeline_mode = #tpu.pipeline_mode<synchronous>, transform_indices = @transform_1, window_bounds = array<i64: 64, 16>}, {transform_indices = @transform_2, window_bounds = array<i64: 1, 8, 128>}]} {
    %c0 = arith.constant 0 : index
    %c0_0 = arith.constant 0 : index
    %c0_1 = arith.constant 0 : index
    %0 = vector.load %arg1[%c0, %c0_0, %c0_1] : memref<1x16x16xf32, #tpu.memory_space<vmem>>, vector<1x16x16xf32>
    %1 = vector.shape_cast %0 : vector<1x16x16xf32> to vector<16x16xf32>
    %c0_2 = arith.constant 0 : index
    %c0_3 = arith.constant 0 : index
    %2 = vector.load %arg2[%c0_2, %c0_3] : memref<64x16xf32, #tpu.memory_space<vmem>>, vector<64x16xf32>
    %cst = arith.constant dense<0.000000e+00> : vector<64x16xf32>
    %3 = tpu.matmul %2, %1, %cst {dimension_numbers = #tpu.dot_dimension_numbers<[1], [0], [0], [1], [0, 0, 1, 1], [], []>} : vector<64x16xf32>, vector<16x16xf32>, vector<64x16xf32> -> vector<64x16xf32>
    %4 = vector.extract_strided_slice %3 {offsets = [0, 0], sizes = [8, 16], strides = [1, 1]} : vector<64x16xf32> to vector<8x16xf32>
    %5 = vector.extract_strided_slice %3 {offsets = [8, 0], sizes = [8, 16], strides = [1, 1]} : vector<64x16xf32> to vector<8x16xf32>
    %6 = vector.extract_strided_slice %3 {offsets = [16, 0], sizes = [8, 16], strides = [1, 1]} : vector<64x16xf32> to vector<8x16xf32>
    %7 = vector.extract_strided_slice %3 {offsets = [24, 0], sizes = [8, 16], strides = [1, 1]} : vector<64x16xf32> to vector<8x16xf32>
    %8 = vector.extract_strided_slice %3 {offsets = [32, 0], sizes = [8, 16], strides = [1, 1]} : vector<64x16xf32> to vector<8x16xf32>
    %9 = vector.extract_strided_slice %3 {offsets = [40, 0], sizes = [8, 16], strides = [1, 1]} : vector<64x16xf32> to vector<8x16xf32>
    %10 = vector.extract_strided_slice %3 {offsets = [48, 0], sizes = [8, 16], strides = [1, 1]} : vector<64x16xf32> to vector<8x16xf32>
    %11 = vector.extract_strided_slice %3 {offsets = [56, 0], sizes = [8, 16], strides = [1, 1]} : vector<64x16xf32> to vector<8x16xf32>
    %12 = arith.mulf %4, %4 : vector<8x16xf32>
    %cst_4 = arith.constant dense<0.000000e+00> : vector<8xf32>
    %13 = vector.multi_reduction <add>, %12, %cst_4 [1] : vector<8x16xf32> to vector<8xf32>
    %14 = vector.shape_cast %13 : vector<8xf32> to vector<8x1xf32>
    %15 = arith.mulf %5, %5 : vector<8x16xf32>
    %cst_5 = arith.constant dense<0.000000e+00> : vector<8xf32>
    %16 = vector.multi_reduction <add>, %15, %cst_5 [1] : vector<8x16xf32> to vector<8xf32>
    %17 = vector.shape_cast %16 : vector<8xf32> to vector<8x1xf32>
    %18 = arith.addf %14, %17 : vector<8x1xf32>
    %19 = arith.mulf %6, %6 : vector<8x16xf32>
    %cst_6 = arith.constant dense<0.000000e+00> : vector<8xf32>
    %20 = vector.multi_reduction <add>, %19, %cst_6 [1] : vector<8x16xf32> to vector<8xf32>
    %21 = vector.shape_cast %20 : vector<8xf32> to vector<8x1xf32>
    %22 = arith.addf %18, %21 : vector<8x1xf32>
    %23 = arith.mulf %7, %7 : vector<8x16xf32>
    %cst_7 = arith.constant dense<0.000000e+00> : vector<8xf32>
    %24 = vector.multi_reduction <add>, %23, %cst_7 [1] : vector<8x16xf32> to vector<8xf32>
    %25 = vector.shape_cast %24 : vector<8xf32> to vector<8x1xf32>
    %26 = arith.addf %22, %25 : vector<8x1xf32>
    %27 = arith.mulf %8, %8 : vector<8x16xf32>
    %cst_8 = arith.constant dense<0.000000e+00> : vector<8xf32>
    %28 = vector.multi_reduction <add>, %27, %cst_8 [1] : vector<8x16xf32> to vector<8xf32>
    %29 = vector.shape_cast %28 : vector<8xf32> to vector<8x1xf32>
    %30 = arith.addf %26, %29 : vector<8x1xf32>
    %31 = arith.mulf %9, %9 : vector<8x16xf32>
    %cst_9 = arith.constant dense<0.000000e+00> : vector<8xf32>
    %32 = vector.multi_reduction <add>, %31, %cst_9 [1] : vector<8x16xf32> to vector<8xf32>
    %33 = vector.shape_cast %32 : vector<8xf32> to vector<8x1xf32>
    %34 = arith.addf %30, %33 : vector<8x1xf32>
    %35 = arith.mulf %10, %10 : vector<8x16xf32>
    %cst_10 = arith.constant dense<0.000000e+00> : vector<8xf32>
    %36 = vector.multi_reduction <add>, %35, %cst_10 [1] : vector<8x16xf32> to vector<8xf32>
    %37 = vector.shape_cast %36 : vector<8xf32> to vector<8x1xf32>
    %38 = arith.addf %34, %37 : vector<8x1xf32>
    %39 = arith.mulf %11, %11 : vector<8x16xf32>
    %cst_11 = arith.constant dense<0.000000e+00> : vector<8xf32>
    %40 = vector.multi_reduction <add>, %39, %cst_11 [1] : vector<8x16xf32> to vector<8xf32>
    %41 = vector.shape_cast %40 : vector<8xf32> to vector<8x1xf32>
    %42 = arith.addf %38, %41 : vector<8x1xf32>
    %cst_12 = arith.constant 9.99999996E-13 : f32
    %43 = vector.broadcast %cst_12 : f32 to vector<8x1xf32>
    %44 = arith.addf %42, %43 : vector<8x1xf32>
    %45 = math.rsqrt %44 : vector<8x1xf32>
    %46 = arith.mulf %42, %45 : vector<8x1xf32>
    %cst_13 = arith.constant 1.000000e+00 : f32
    %47 = vector.broadcast %cst_13 : f32 to vector<8x1xf32>
    %48 = arith.addf %47, %42 : vector<8x1xf32>
    %49 = arith.divf %46, %48 : vector<8x1xf32>
    %50 = vector.broadcast %49 : vector<8x1xf32> to vector<8x16xf32>
    %51 = arith.mulf %4, %50 : vector<8x16xf32>
    %c0_14 = arith.constant 0 : index
    %c0_15 = arith.constant 0 : index
    %c0_16 = arith.constant 0 : index
    %52 = vector.load %arg3[%c0_14, %c0_15, %c0_16] : memref<1x8x128xf32, #tpu.memory_space<vmem>>, vector<1x8x16xf32>
    %53 = vector.shape_cast %52 : vector<1x8x16xf32> to vector<8x16xf32>
    %54 = vector.shape_cast %51 : vector<8x16xf32> to vector<1x8x16xf32>
    tpu.vector_store %arg3[%c0_14, %c0_15, %c0_16], %54 {strides = array<i32>} : memref<1x8x128xf32, #tpu.memory_space<vmem>>, vector<1x8x16xf32>,
    %55 = vector.broadcast %49 : vector<8x1xf32> to vector<8x16xf32>
    %56 = arith.mulf %5, %55 : vector<8x16xf32>
    %c0_17 = arith.constant 0 : index
    %c0_18 = arith.constant 0 : index
    %c16 = arith.constant 16 : index
    %57 = vector.load %arg3[%c0_17, %c0_18, %c16] : memref<1x8x128xf32, #tpu.memory_space<vmem>>, vector<1x8x16xf32>
    %58 = vector.shape_cast %57 : vector<1x8x16xf32> to vector<8x16xf32>
    %59 = vector.shape_cast %56 : vector<8x16xf32> to vector<1x8x16xf32>
    tpu.vector_store %arg3[%c0_17, %c0_18, %c16], %59 {strides = array<i32>} : memref<1x8x128xf32, #tpu.memory_space<vmem>>, vector<1x8x16xf32>,
    %60 = vector.broadcast %49 : vector<8x1xf32> to vector<8x16xf32>
    %61 = arith.mulf %6, %60 : vector<8x16xf32>
    %c0_19 = arith.constant 0 : index
    %c0_20 = arith.constant 0 : index
    %c32 = arith.constant 32 : index
    %62 = vector.load %arg3[%c0_19, %c0_20, %c32] : memref<1x8x128xf32, #tpu.memory_space<vmem>>, vector<1x8x16xf32>
    %63 = vector.shape_cast %62 : vector<1x8x16xf32> to vector<8x16xf32>
    %64 = vector.shape_cast %61 : vector<8x16xf32> to vector<1x8x16xf32>
    tpu.vector_store %arg3[%c0_19, %c0_20, %c32], %64 {strides = array<i32>} : memref<1x8x128xf32, #tpu.memory_space<vmem>>, vector<1x8x16xf32>,
    %65 = vector.broadcast %49 : vector<8x1xf32> to vector<8x16xf32>
    %66 = arith.mulf %7, %65 : vector<8x16xf32>
    %c0_21 = arith.constant 0 : index
    %c0_22 = arith.constant 0 : index
    %c48 = arith.constant 48 : index
    %67 = vector.load %arg3[%c0_21, %c0_22, %c48] : memref<1x8x128xf32, #tpu.memory_space<vmem>>, vector<1x8x16xf32>
    %68 = vector.shape_cast %67 : vector<1x8x16xf32> to vector<8x16xf32>
    %69 = vector.shape_cast %66 : vector<8x16xf32> to vector<1x8x16xf32>
    tpu.vector_store %arg3[%c0_21, %c0_22, %c48], %69 {strides = array<i32>} : memref<1x8x128xf32, #tpu.memory_space<vmem>>, vector<1x8x16xf32>,
    %70 = vector.broadcast %49 : vector<8x1xf32> to vector<8x16xf32>
    %71 = arith.mulf %8, %70 : vector<8x16xf32>
    %c0_23 = arith.constant 0 : index
    %c0_24 = arith.constant 0 : index
    %c64 = arith.constant 64 : index
    %72 = vector.load %arg3[%c0_23, %c0_24, %c64] : memref<1x8x128xf32, #tpu.memory_space<vmem>>, vector<1x8x16xf32>
    %73 = vector.shape_cast %72 : vector<1x8x16xf32> to vector<8x16xf32>
    %74 = vector.shape_cast %71 : vector<8x16xf32> to vector<1x8x16xf32>
    tpu.vector_store %arg3[%c0_23, %c0_24, %c64], %74 {strides = array<i32>} : memref<1x8x128xf32, #tpu.memory_space<vmem>>, vector<1x8x16xf32>,
    %75 = vector.broadcast %49 : vector<8x1xf32> to vector<8x16xf32>
    %76 = arith.mulf %9, %75 : vector<8x16xf32>
    %c0_25 = arith.constant 0 : index
    %c0_26 = arith.constant 0 : index
    %c80 = arith.constant 80 : index
    %77 = vector.load %arg3[%c0_25, %c0_26, %c80] : memref<1x8x128xf32, #tpu.memory_space<vmem>>, vector<1x8x16xf32>
    %78 = vector.shape_cast %77 : vector<1x8x16xf32> to vector<8x16xf32>
    %79 = vector.shape_cast %76 : vector<8x16xf32> to vector<1x8x16xf32>
    tpu.vector_store %arg3[%c0_25, %c0_26, %c80], %79 {strides = array<i32>} : memref<1x8x128xf32, #tpu.memory_space<vmem>>, vector<1x8x16xf32>,
    %80 = vector.broadcast %49 : vector<8x1xf32> to vector<8x16xf32>
    %81 = arith.mulf %10, %80 : vector<8x16xf32>
    %c0_27 = arith.constant 0 : index
    %c0_28 = arith.constant 0 : index
    %c96 = arith.constant 96 : index
    %82 = vector.load %arg3[%c0_27, %c0_28, %c96] : memref<1x8x128xf32, #tpu.memory_space<vmem>>, vector<1x8x16xf32>
    %83 = vector.shape_cast %82 : vector<1x8x16xf32> to vector<8x16xf32>
    %84 = vector.shape_cast %81 : vector<8x16xf32> to vector<1x8x16xf32>
    tpu.vector_store %arg3[%c0_27, %c0_28, %c96], %84 {strides = array<i32>} : memref<1x8x128xf32, #tpu.memory_space<vmem>>, vector<1x8x16xf32>,
    %85 = vector.broadcast %49 : vector<8x1xf32> to vector<8x16xf32>
    %86 = arith.mulf %11, %85 : vector<8x16xf32>
    %c0_29 = arith.constant 0 : index
    %c0_30 = arith.constant 0 : index
    %c112 = arith.constant 112 : index
    %87 = vector.load %arg3[%c0_29, %c0_30, %c112] : memref<1x8x128xf32, #tpu.memory_space<vmem>>, vector<1x8x16xf32>
    %88 = vector.shape_cast %87 : vector<1x8x16xf32> to vector<8x16xf32>
    %89 = vector.shape_cast %86 : vector<8x16xf32> to vector<1x8x16xf32>
    tpu.vector_store %arg3[%c0_29, %c0_30, %c112], %89 {strides = array<i32>} : memref<1x8x128xf32, #tpu.memory_space<vmem>>, vector<1x8x16xf32>,
    return
  }
  func.func @transform_0(%arg0: i32) -> (i32, i32, i32) {
    %c0_i32 = arith.constant 0 : i32
    %c0_i32_0 = arith.constant 0 : i32
    %c0_i32_1 = arith.constant 0 : i32
    return %arg0, %c0_i32, %c0_i32_0 : i32, i32, i32
  }
  func.func @transform_1(%arg0: i32) -> (i32, i32) {
    %c0_i32 = arith.constant 0 : i32
    %c0_i32_0 = arith.constant 0 : i32
    %c0_i32_1 = arith.constant 0 : i32
    return %c0_i32, %c0_i32_0 : i32, i32
  }
  func.func @transform_2(%arg0: i32) -> (i32, i32, i32) {
    %c0_i32 = arith.constant 0 : i32
    %c0_i32_0 = arith.constant 0 : i32
    %c0_i32_1 = arith.constant 0 : i32
    return %arg0, %c0_i32, %c0_i32_0 : i32, i32, i32
  }
}

</mosaic_0001>

<llo_original>
// kernel: tpu_custom_call.1
$region0: #{tpu_custom_call.1}
  #allocation0 [shape = 'u32[]', space=smem, size = 0x4, offset = 0x4, fixed_abs, tag = 'smem constant byte address 0x4 - core index']
  #allocation1 [shape = 'u32[144,128]{1,0:T(1,128)}', space=vmem, size = 0x12000, scoped, tag = 'internal scratch']
  %s0 = inlined_call_operand.vmem [shape: f32[2,16,16], index: 0, kind: input, shape index: {}]
  %s1 = inlined_call_operand.vmem [shape: f32[64,16], index: 1, kind: input, shape index: {}]
  %s2 = inlined_call_operand.hbm [shape: f32[2,8,128], index: 2, kind: output, shape index: {}]
  %s3 = sld [smem:[#allocation0]]
  $region41: #{tpu_custom_call.1} parent=0
    _
  %s5 = ssub.s32 1, %s3
  %s6 = scalar_select 0, %s5, %s3
  $region1: #{tpu_custom_call.1} parent=0
    #allocation2 [shape = 'u8[8192]{0}', space=vmem, size = 0x2000, scoped, tag = 'output window, operand 0']
    #allocation3 [shape = 's32[2]{0}', space=sflag, size = 0x8, scoped, tag = 'scoped memory for tpu_custom_call.1']
    %7 = vsyncpa [#allocation3], 0
    %s8 = scalar_lea.sflag [#allocation3], 1
    %9 = vsyncpa %s8, 0
    loop: start=0, step=1, limit=4
    $region2: #{tpu_custom_call.1} parent=1 // loop_pre_header
      _
    $region3: #{tpu_custom_call.1} parent=1 // loop_header
      %s11 = sphi 0, %s15
      %p12 = scmp.ge.s32.totalorder %s11, 4
      %s21 = sphi 0, %s23
      %s24 = sphi 0, %s21
      %s25 = sphi 0, %s24
      %s41 = sphi 0, %s25
      %s45 = sphi 0, %s45
      %s47 = sphi 0, %s45
      %s48 = sphi 0, %s47
      %s62 = sphi 0, %s48
      %s68 = sphi 0, %s70
      %s71 = sphi 0, %s68
      %s72 = sphi 0, %s71
      %s88 = sphi 0, %s72
    $region4: #{tpu_custom_call.1} parent=1 // loop_header_branch
      %14 = sbr.rel (%p12) target = $region8
    $region5: #{tpu_custom_call.1} parent=1 // loop_body
      %s16 = ssub.s32 %s11, 1
      %s17 = ssub.s32 %s11, 2
      %s18 = sadd.s32 %s11, 1
      %s19 = ssub.s32 %s11, %s18
      %p20 = scmp.eq.s32.totalorder %s19, 0
      %s22 = sadd.s32 %s21, 1
      %s23 = scalar_select %p20, %s21, %s22
      %p26 = pneg %p20
      %p27 = scmp.eq.s32.totalorder %s11, 1
      %p28 = por %p26, %p27
      %p29 = scmp.ne.s32.totalorder %s21, %s24
      %p30 = scmp.eq.s32.totalorder %s11, 0
      %p31 = por %p29, %p30
      %p32 = scmp.ne.s32.totalorder %s21, %s24
      %p33 = scmp.eq.s32.totalorder %s16, 1
      %p34 = por %p32, %p33
      %p35 = scmp.ne.s32.totalorder %s24, %s25
      %p36 = scmp.eq.s32.totalorder %s16, 0
      %p37 = por %p35, %p36
      %p38 = scmp.ne.s32.totalorder %s24, %s25
      %p39 = scmp.eq.s32.totalorder %s17, 1
      %p40 = por %p38, %p39
      %p42 = scmp.ne.s32.totalorder %s25, %s41
      %p43 = scmp.eq.s32.totalorder %s17, 0
      %p44 = por %p42, %p43
      %s46 = sadd.s32 %s45, 1
      %p49 = scmp.eq.s32.totalorder %s11, 1
      %p50 = scmp.ne.s32.totalorder %s45, %s47
      %p51 = scmp.eq.s32.totalorder %s11, 0
      %p52 = por %p50, %p51
      %p53 = scmp.ne.s32.totalorder %s45, %s47
      %p54 = scmp.eq.s32.totalorder %s16, 1
      %p55 = por %p53, %p54
      %p56 = scmp.ne.s32.totalorder %s47, %s48
      %p57 = scmp.eq.s32.totalorder %s16, 0
      %p58 = por %p56, %p57
      %p59 = scmp.ne.s32.totalorder %s47, %s48
      %p60 = scmp.eq.s32.totalorder %s17, 1
      %p61 = por %p59, %p60
      %p63 = scmp.ne.s32.totalorder %s48, %s62
      %p64 = scmp.eq.s32.totalorder %s17, 0
      %p65 = por %p63, %p64
      %s66 = ssub.s32 %s11, %s18
      %p67 = scmp.eq.s32.totalorder %s66, 0
      %s69 = sadd.s32 %s68, 1
      %s70 = scalar_select %p67, %s68, %s69
      %p73 = pneg %p67
      %p74 = scmp.eq.s32.totalorder %s11, 1
      %p75 = por %p73, %p74
      %p76 = scmp.ne.s32.totalorder %s68, %s71
      %p77 = scmp.eq.s32.totalorder %s11, 0
      %p78 = por %p76, %p77
      %p79 = scmp.ne.s32.totalorder %s68, %s71
      %p80 = scmp.eq.s32.totalorder %s16, 1
      %p81 = por %p79, %p80
      %p82 = scmp.ne.s32.totalorder %s71, %s72
      %p83 = scmp.eq.s32.totalorder %s16, 0
      %p84 = por %p82, %p83
      %p85 = scmp.ne.s32.totalorder %s71, %s72
      %p86 = scmp.eq.s32.totalorder %s17, 1
      %p87 = por %p85, %p86
      %p89 = scmp.ne.s32.totalorder %s72, %s88
      %p90 = scmp.eq.s32.totalorder %s17, 0
      %p91 = por %p89, %p90
      %p92 = scmp.le.s32.totalorder 1, %s11
      %p93 = scmp.lt.s32.totalorder %s11, 3
      %p94 = pnand %p92, %p93
      %p95 = pneg %p94
      // Predicated region
      $region9: #{tpu_custom_call.1} parent=5 // pred_check
        _
      $region10: #{tpu_custom_call.1} parent=5 // pred_check_branch
        %97 = sbr.rel (%p94) target = $region12
      $region11: #{tpu_custom_call.1} parent=5 // pred_region
        %s98 = ssub.s32 %s11, 1
        // Predicated region
        $region13: #{tpu_custom_call.1} parent=11 // pred_check
          %p99 = pneg %p58
        $region14: #{tpu_custom_call.1} parent=11 // pred_check_branch
          %101 = sbr.rel (%p99) target = $region16
        $region15: #{tpu_custom_call.1} parent=11 // pred_region
          _
        $region16: #{tpu_custom_call.1} parent=11 // pred_fallthru
          _
      $region12: #{tpu_custom_call.1} parent=5 // pred_fallthru
        _
      %p102 = scmp.lt.s32.totalorder %s11, 2
      // Predicated region
      $region17: #{tpu_custom_call.1} parent=5 // pred_check
        %p103 = pneg %p102
      $region18: #{tpu_custom_call.1} parent=5 // pred_check_branch
        %105 = sbr.rel (%p103) target = $region20
      $region19: #{tpu_custom_call.1} parent=5 // pred_region
        // Predicated region
        $region21: #{tpu_custom_call.1} parent=19 // pred_check
          %p106 = pneg %p31
        $region22: #{tpu_custom_call.1} parent=19 // pred_check_branch
          %108 = sbr.rel (%p106) target = $region24
        $region23: #{tpu_custom_call.1} parent=19 // pred_region
          %p109 = scmp.lt.s32.totalorder %s11, 1
          %s110 = scalar_select %p109, %s11, 1
          %s111 = smul.addr %s110, 2
          %s112 = smul.addr %s111, 8
          %s113 = scalar_lea.vmem %s0, %s112
        $region24: #{tpu_custom_call.1} parent=19 // pred_fallthru
          _
      $region20: #{tpu_custom_call.1} parent=5 // pred_fallthru
        _
      %p114 = scmp.le.s32.totalorder 1, %s11
      %p115 = scmp.lt.s32.totalorder %s11, 3
      %p116 = pnand %p114, %p115
      %p117 = pneg %p116
      // Predicated region
      $region25: #{tpu_custom_call.1} parent=5 // pred_check
        _
      $region26: #{tpu_custom_call.1} parent=5 // pred_check_branch
        %119 = sbr.rel (%p116) target = $region28
      $region27: #{tpu_custom_call.1} parent=5 // pred_region
        %s120 = ssub.s32 %s11, 1
        %p121 = scmp.lt.s32.totalorder %s16, 1
        %s122 = scalar_select %p121, %s16, 1
        %s123 = smul.addr %s122, 2
        %s124 = smul.addr %s123, 8
        %s125 = scalar_lea.vmem %s0, %s124
        %p126 = pneg %p37
        %p127 = pneg %p34
        %p128 = pneg %p58
        %p129 = pneg %p55
        %p130 = pneg %p84
        %p131 = pneg %p81
        %s132 = sand.u32 %s71, 1
        %s133 = scalar_lea.sflag [#allocation3], %s132
        %s134 = sand.u32 %s71, 1
        %s135 = smul.addr %s134, 8
        %s136 = scalar_lea.vmem [#allocation2], %s135
        %p137 = scmp.lt.s32.totalorder %s16, 1
        %s138 = scalar_select %p137, %s16, 1
        %s139 = smul.addr %s138, 2
        %s140 = smul.addr %s139, 8
        %s141 = scalar_lea.vmem %s0, %s140
        %v142 = vld [vmem:[%s141] sm:$0xff]
        %v143 = vld [vmem:[%s141 + $0x8] sm:$0xff]
        %v144 = vld [vmem:[%s1] sm:$0xff]
        %v145 = vld [vmem:[%s1 + $0x8] sm:$0xff]
        %v146 = vld [vmem:[%s1 + $0x10] sm:$0xff]
        %v147 = vld [vmem:[%s1 + $0x18] sm:$0xff]
        %v148 = vld [vmem:[%s1 + $0x20] sm:$0xff]
        %v149 = vld [vmem:[%s1 + $0x28] sm:$0xff]
        %v150 = vld [vmem:[%s1 + $0x30] sm:$0xff]
        %v151 = vld [vmem:[%s1 + $0x38] sm:$0xff]
        %vm152 = vcmask 130048
        %v154 = vsel %vm152, %v144, 0
        %v157 = vsel %vm152, %v145, 0
        %v160 = vsel %vm152, %v146, 0
        %v163 = vsel %vm152, %v147, 0
        %v166 = vsel %vm152, %v148, 0
        %v169 = vsel %vm152, %v149, 0
        %v172 = vsel %vm152, %v150, 0
        %v175 = vsel %vm152, %v151, 0
        %177 = vmatprep.subr.mxu0 0.0
        %178 = vmatpush1.msra.mxu0 0.0
        %179 = vmatprep.subr.mxu0 0.0
        %180 = vmatpush1.msra.mxu0 0.0
        %181 = vmatprep.subr.mxu0 0.0
        %182 = vmatpush1.msra.mxu0 0.0
        %183 = vmatprep.subr.mxu0 0.0
        %184 = vmatpush1.msra.mxu0 0.0
        %185 = vmatprep.subr.mxu0 0.0
        %186 = vmatpush1.msra.mxu0 0.0
        %187 = vmatprep.subr.mxu0 0.0
        %188 = vmatpush1.msra.mxu0 0.0
        %189 = vmatprep.subr.mxu0 0.0
        %190 = vmatpush1.msra.mxu0 0.0
        %191 = vmatprep.subr.mxu0 0.0
        %192 = vmatpush1.msra.mxu0 0.0
        %193 = vmatprep.subr.mxu0 0.0
        %194 = vmatpush1.msra.mxu0 0.0
        %195 = vmatprep.subr.mxu0 0.0
        %196 = vmatpush1.msra.mxu0 0.0
        %197 = vmatprep.subr.mxu0 0.0
        %198 = vmatpush1.msra.mxu0 0.0
        %199 = vmatprep.subr.mxu0 0.0
        %200 = vmatpush1.msra.mxu0 0.0
        %201 = vmatprep.subr.mxu0 0.0
        %202 = vmatpush1.msra.mxu0 0.0
        %203 = vmatprep.subr.mxu0 0.0
        %204 = vmatpush1.msra.mxu0 0.0
        %205 = vmatprep.subr.mxu0 0.0
        %206 = vmatpush1.msra.mxu0 %v143
        %207 = vmatprep.subr.mxu0 0.0
        %208 = vmatpush1.msra.mxu0 %v142
        %209 = vmatprep.subr.mxu0 0.0
        %210 = vmatpush2.msra.mxu0 0.0
        %211 = vmatprep.subr.mxu0 0.0
        %212 = vmatpush2.msra.mxu0 0.0
        %213 = vmatprep.subr.mxu0 0.0
        %214 = vmatpush2.msra.mxu0 0.0
        %215 = vmatprep.subr.mxu0 0.0
        %216 = vmatpush2.msra.mxu0 0.0
        %217 = vmatprep.subr.mxu0 0.0
        %218 = vmatpush2.msra.mxu0 0.0
        %219 = vmatprep.subr.mxu0 0.0
        %220 = vmatpush2.msra.mxu0 0.0
        %221 = vmatprep.subr.mxu0 0.0
        %222 = vmatpush2.msra.mxu0 0.0
        %223 = vmatprep.subr.mxu0 0.0
        %224 = vmatpush2.msra.mxu0 0.0
        %225 = vmatprep.subr.mxu0 0.0
        %226 = vmatpush2.msra.mxu0 0.0
        %227 = vmatprep.subr.mxu0 0.0
        %228 = vmatpush2.msra.mxu0 0.0
        %229 = vmatprep.subr.mxu0 0.0
        %230 = vmatpush2.msra.mxu0 0.0
        %231 = vmatprep.subr.mxu0 0.0
        %232 = vmatpush2.msra.mxu0 0.0
        %233 = vmatprep.subr.mxu0 0.0
        %234 = vmatpush2.msra.mxu0 0.0
        %235 = vmatprep.subr.mxu0 0.0
        %236 = vmatpush2.msra.mxu0 0.0
        %237 = vmatprep.subr.mxu0 0.0
        %238 = vmatpush2.msra.mxu0 0.0
        %239 = vmatprep.subr.mxu0 0.0
        %240 = vmatpush2.msra.mxu0 0.0
        %241 = vmatprep.mubr.f32.mxu0 0.0
        %242 = vmatmul.mubr.f32.gmra.mxu0 %v154
        %v243 = vpop.f32.mrf.mxu0
        %v244 = vadd.f32 0.0, %v243
        %v245 = vpop.f32.mrf.mxu0
        %246 = vmatprep.mubr.f32.mxu0 0.0
        %247 = vmatmul.mubr.f32.gmra.mxu0 %v157
        %v248 = vpop.f32.mrf.mxu0
        %v249 = vadd.f32 0.0, %v248
        %v250 = vpop.f32.mrf.mxu0
        %251 = vmatprep.mubr.f32.mxu0 0.0
        %252 = vmatmul.mubr.f32.gmra.mxu0 %v160
        %v253 = vpop.f32.mrf.mxu0
        %v254 = vadd.f32 0.0, %v253
        %v255 = vpop.f32.mrf.mxu0
        %256 = vmatprep.mubr.f32.mxu0 0.0
        %257 = vmatmul.mubr.f32.gmra.mxu0 %v163
        %v258 = vpop.f32.mrf.mxu0
        %v259 = vadd.f32 0.0, %v258
        %v260 = vpop.f32.mrf.mxu0
        %261 = vmatprep.mubr.f32.mxu0 0.0
        %262 = vmatmul.mubr.f32.gmra.mxu0 %v166
        %v263 = vpop.f32.mrf.mxu0
        %v264 = vadd.f32 0.0, %v263
        %v265 = vpop.f32.mrf.mxu0
        %266 = vmatprep.mubr.f32.mxu0 0.0
        %267 = vmatmul.mubr.f32.gmra.mxu0 %v169
        %v268 = vpop.f32.mrf.mxu0
        %v269 = vadd.f32 0.0, %v268
        %v270 = vpop.f32.mrf.mxu0
        %271 = vmatprep.mubr.f32.mxu0 0.0
        %272 = vmatmul.mubr.f32.gmra.mxu0 %v172
        %v273 = vpop.f32.mrf.mxu0
        %v274 = vadd.f32 0.0, %v273
        %v275 = vpop.f32.mrf.mxu0
        %276 = vmatprep.mubr.f32.mxu0 0.0
        %277 = vmatmul.mubr.f32.gmra.mxu0 %v175
        %v278 = vpop.f32.mrf.mxu0
        %v279 = vadd.f32 0.0, %v278
        %v280 = vpop.f32.mrf.mxu0
        %281 = vdwg.mxu0
        %v282 = vmul.f32 %v244, %v244
        %v283 = vsel %vm152, %v282, 0.0
        %284 = vadd.xlane.f32.xlu0 %v283
        %v285 = vpop.xlane.xlu0 %284
        %v286 = vmul.f32 %v249, %v249
        %v287 = vsel %vm152, %v286, 0.0
        %288 = vadd.xlane.f32.xlu0 %v287
        %v289 = vpop.xlane.xlu0 %288
        %v290 = vadd.f32 %v285, %v289
        %v291 = vmul.f32 %v254, %v254
        %v292 = vsel %vm152, %v291, 0.0
        %293 = vadd.xlane.f32.xlu0 %v292
        %v294 = vpop.xlane.xlu0 %293
        %v295 = vadd.f32 %v290, %v294
        %v296 = vmul.f32 %v259, %v259
        %v297 = vsel %vm152, %v296, 0.0
        %298 = vadd.xlane.f32.xlu0 %v297
        %v299 = vpop.xlane.xlu0 %298
        %v300 = vadd.f32 %v295, %v299
        %v301 = vmul.f32 %v264, %v264
        %v302 = vsel %vm152, %v301, 0.0
        %303 = vadd.xlane.f32.xlu0 %v302
        %v304 = vpop.xlane.xlu0 %303
        %v305 = vadd.f32 %v300, %v304
        %v306 = vmul.f32 %v269, %v269
        %v307 = vsel %vm152, %v306, 0.0
        %308 = vadd.xlane.f32.xlu0 %v307
        %v309 = vpop.xlane.xlu0 %308
        %v310 = vadd.f32 %v305, %v309
        %v311 = vmul.f32 %v274, %v274
        %v312 = vsel %vm152, %v311, 0.0
        %313 = vadd.xlane.f32.xlu0 %v312
        %v314 = vpop.xlane.xlu0 %313
        %v315 = vadd.f32 %v310, %v314
        %v316 = vmul.f32 %v279, %v279
        %v317 = vsel %vm152, %v316, 0.0
        %318 = vadd.xlane.f32.xlu0 %v317
        %v319 = vpop.xlane.xlu0 %318
        %v320 = vadd.f32 %v315, %v319
        %v321 = vadd.f32 %v320, 1e-12
        %v322 = vrsqrt.pop %v321
        %v323 = vmul.f32 %v320, %v322
        %v324 = vadd.f32 %v320, 1.0
        %v325 = vrcp.pop %v324
        %v326 = vmul.f32 %v323, %v325
        %v327 = vmul.f32 %v244, %v326
        %328 = vst.msk [vmem:[%s136] sm:$0xff] %vm152, %v327
        %v329 = vmul.f32 %v249, %v326
        %331 = vrot.lane.b32.xlu0 %v329, 16
        %v332 = vpop.permute.xlu0 %331
        %vm334 = vcmask 261248
        %335 = vst.msk [vmem:[%s136] sm:$0xff] %vm334, %v332
        %v336 = vmul.f32 %v254, %v326
        %338 = vrot.lane.b32.xlu0 %v336, 32
        %v339 = vpop.permute.xlu0 %338
        %vm341 = vcmask 392448
        %342 = vst.msk [vmem:[%s136] sm:$0xff] %vm341, %v339
        %v343 = vmul.f32 %v259, %v326
        %345 = vrot.lane.b32.xlu0 %v343, 48
        %v346 = vpop.permute.xlu0 %345
        %vm348 = vcmask 523648
        %349 = vst.msk [vmem:[%s136] sm:$0xff] %vm348, %v346
        %v350 = vmul.f32 %v264, %v326
        %352 = vrot.lane.b32.xlu0 %v350, 64
        %v353 = vpop.permute.xlu0 %352
        %vm355 = vcmask 654848
        %356 = vst.msk [vmem:[%s136] sm:$0xff] %vm355, %v353
        %v357 = vmul.f32 %v269, %v326
        %359 = vrot.lane.b32.xlu0 %v357, 80
        %v360 = vpop.permute.xlu0 %359
        %vm362 = vcmask 786048
        %363 = vst.msk [vmem:[%s136] sm:$0xff] %vm362, %v360
        %v364 = vmul.f32 %v274, %v326
        %366 = vrot.lane.b32.xlu0 %v364, 96
        %v367 = vpop.permute.xlu0 %366
        %vm369 = vcmask 917248
        %370 = vst.msk [vmem:[%s136] sm:$0xff] %vm369, %v367
        %v371 = vmul.f32 %v279, %v326
        %373 = vrot.lane.b32.xlu0 %v371, 112
        %v374 = vpop.permute.xlu0 %373
        %vm376 = vcmask 1048448
        %377 = vst.msk [vmem:[%s136] sm:$0xff] %vm376, %v374
        %s378 = sand.u32 %s71, 1
        %s379 = scalar_lea.sflag [#allocation3], %s378
        %s380 = sand.u32 %s71, 1
        %s381 = smul.addr %s380, 8
        %s382 = scalar_lea.vmem [#allocation2], %s381
        // Predicated region
        $region29: #{tpu_custom_call.1} parent=27 // pred_check
          %p383 = pneg %p81
        $region30: #{tpu_custom_call.1} parent=27 // pred_check_branch
          %385 = sbr.rel (%p383) target = $region32
        $region31: #{tpu_custom_call.1} parent=27 // pred_region
          %s387 = ssub.s32 128, 128
          %388 = vsyncadd %s379, %s387
          %s389 = smul.addr %s16, 128
          %s390 = scalar_lea.hbm %s2, %s389
          %s392 = sshll.u32 %s382, 4
          %s393 = int_to_ptr.vmem [resolvable:$true] %s392
          %395 = dma.vmem_to_hbm [thread:$0]  %s393, 128, %s390, %s379
        $region32: #{tpu_custom_call.1} parent=27 // pred_fallthru
          _
      $region28: #{tpu_custom_call.1} parent=5 // pred_fallthru
        _
      %p396 = scmp.le.s32.totalorder 2, %s11
      // Predicated region
      $region33: #{tpu_custom_call.1} parent=5 // pred_check
        %p397 = pneg %p396
      $region34: #{tpu_custom_call.1} parent=5 // pred_check_branch
        %399 = sbr.rel (%p397) target = $region36
      $region35: #{tpu_custom_call.1} parent=5 // pred_region
        %s400 = ssub.s32 %s11, 2
        // Predicated region
        $region37: #{tpu_custom_call.1} parent=35 // pred_check
          %p401 = pneg %p87
        $region38: #{tpu_custom_call.1} parent=35 // pred_check_branch
          %403 = sbr.rel (%p401) target = $region40
        $region39: #{tpu_custom_call.1} parent=35 // pred_region
          %s404 = sand.u32 %s72, 1
          %s405 = scalar_lea.sflag [#allocation3], %s404
          %s406 = sand.u32 %s72, 1
          %s407 = smul.addr %s406, 8
          %s408 = scalar_lea.vmem [#allocation2], %s407
          %409 = dma.done %s405, 128
        $region40: #{tpu_custom_call.1} parent=35 // pred_fallthru
          _
      $region36: #{tpu_custom_call.1} parent=5 // pred_fallthru
        _
    $region6: #{tpu_custom_call.1} parent=1 // loop_footer
      %s15 = sadd.s32 1, %s11
    $region7: #{tpu_custom_call.1} parent=1 // loop_footer_branch
      %10 = sbr.rel target = $region3
    $region8: #{tpu_custom_call.1} parent=1 // loop_exit
      _
    %410 = vsyncpa [#allocation3], 1
    %s411 = scalar_lea.sflag [#allocation3], 1
    %412 = vsyncpa %s411, 1

</llo_original>
